<compile_context>
chip_gen: v6e
topology: v6e:2x2x1
jax: 0.10.0
libtpu: 0.0.40
codegen_flags: <defaults>
</compile_context>

<pallas_src>
import functools
import math

import jax
import jax.numpy as jnp
from jax.experimental import pallas as pl
from jax.experimental.pallas import tpu as pltpu


def _softplus_kernel(b_ref, o_ref, *, eps):
    # Stable softplus computed in f32:  softplus(x) = max(x,0) + log1p(exp(-|x|))
    b = b_ref[...].astype(jnp.float32)
    sp = jnp.maximum(b, 0.0) + jnp.log1p(jnp.exp(-jnp.abs(b)))
    o_ref[...] = (sp + jnp.float32(eps)).astype(o_ref.dtype)


@functools.partial(jax.jit, static_argnames=("eps",))
def variance_encoder_variance(b, eps=1e-5):
    """softplus(b) + eps, same shape/dtype as b.  Hoist this out of the
    per-step loop: it only depends on the parameter, not on the input x."""
    orig_shape = b.shape
    flat = b.reshape(1, b.size)  # free layout-level reshape; lane-dense last dim

    out = pl.pallas_call(
        functools.partial(_softplus_kernel, eps=float(eps)),
        out_shape=jax.ShapeDtypeStruct(flat.shape, flat.dtype),
        in_specs=[pl.BlockSpec(memory_space=pltpu.VMEM)],
        out_specs=pl.BlockSpec(memory_space=pltpu.VMEM),
    )(flat)

    return out.reshape(orig_shape)


def variance_encoder_forward(x, b, eps=1e-5):
    """Equivalent of VarianceEncoder.forward(x): x is unused (matches PyTorch).
    Returns softplus(b) + eps with b's own shape ((1,C,1,1) or (1,1,C))."""
    del x  # forward does not depend on the input
    return variance_encoder_variance(b, eps=eps)


def make_variance_encoder_params(shape, init=0.1, eps=1e-5, channelwise=True,
                                 dtype=jnp.float32):
    """Deterministic parameter init matching the PyTorch __init__:
    b = inverse_softplus(init - eps) = log(exp(init - eps) - 1)."""
    init_val = math.log(math.exp(init - eps) - 1.0)
    if channelwise:
        if len(shape) == 4:
            b_shape = (1, shape[1], 1, 1)
        elif len(shape) == 3:
            b_shape = (1, 1, shape[2])
        else:
            raise ValueError()
    else:
        b_shape = shape
    return jnp.full(b_shape, init_val, dtype=dtype)


if __name__ == "__main__":
    key = jax.random.PRNGKey(0)
    eps = 1e-5

    # --- 4D channelwise case: x is NCHW (2, 4, 16, 16), b is (1, 4, 1, 1). ---
    B, C, H, W = 2, 4, 16, 16
    x = jax.random.normal(key, (B, C, H, W), dtype=jnp.float32)
    b = make_variance_encoder_params((B, C, H, W), init=0.1, eps=eps)

    # Hoisted: compute once per parameter value ...
    var = jax.block_until_ready(variance_encoder_variance(b, eps=eps))
    # ... and the module-style forward just reuses the same jitted computation.
    out = jax.block_until_ready(variance_encoder_forward(x, b, eps=eps))

    ref = jax.nn.softplus(b) + eps
    assert out.shape == (1, C, 1, 1)
    assert jnp.allclose(var, ref, rtol=1e-6, atol=1e-6)
    assert jnp.allclose(out, ref, rtol=1e-6, atol=1e-6)
    # By construction softplus(inverse_softplus(init - eps)) + eps == init.
    assert jnp.allclose(out, 0.1, rtol=1e-5, atol=1e-5)

    # --- 3D channelwise case: x is (2, 8, 32), b is (1, 1, 32). ---
    B3, T3, D3 = 2, 8, 32
    x3 = jax.random.normal(jax.random.PRNGKey(1), (B3, T3, D3), dtype=jnp.float32)
    b3 = make_variance_encoder_params((B3, T3, D3), init=0.1, eps=eps)

    out3 = jax.block_until_ready(variance_encoder_forward(x3, b3, eps=eps))

    ref3 = jax.nn.softplus(b3) + eps
    assert out3.shape == (1, 1, D3)
    assert jnp.allclose(out3, ref3, rtol=1e-6, atol=1e-6)
    assert jnp.allclose(out3, 0.1, rtol=1e-5, atol=1e-5)

    print("KERNEL_OK")
</pallas_src>

<mosaic_0001>
module attributes {stable_mosaic.version = 11 : i64} {
  func.func @_softplus_kernel(%arg0: memref<1x4xf32, #tpu.memory_space<vmem>>, %arg1: memref<1x4xf32, #tpu.memory_space<vmem>>) attributes {dimension_semantics = [], scalar_prefetch = 0 : i64, scratch_operands = 0 : i64, tpu.core_type = #tpu.core_type<tc>} {
    %c0 = arith.constant 0 : index
    %c0_0 = arith.constant 0 : index
    %0 = vector.load %arg0[%c0, %c0_0] : memref<1x4xf32, #tpu.memory_space<vmem>>, vector<1x4xf32>
    %cst = arith.constant 0.000000e+00 : f32
    %1 = vector.broadcast %cst : f32 to vector<1x4xf32>
    %2 = arith.maximumf %0, %1 : vector<1x4xf32>
    %3 = math.absf %0 : vector<1x4xf32>
    %cst_1 = arith.constant 0.000000e+00 : f32
    %4 = vector.broadcast %cst_1 : f32 to vector<1x4xf32>
    %5 = arith.subf %4, %3 : vector<1x4xf32>
    %6 = math.exp %5 : vector<1x4xf32>
    %7 = math.log1p %6 : vector<1x4xf32>
    %8 = arith.addf %2, %7 : vector<1x4xf32>
    %cst_2 = arith.constant 9.99999974E-6 : f32
    %9 = vector.broadcast %cst_2 : f32 to vector<1x4xf32>
    %10 = arith.addf %8, %9 : vector<1x4xf32>
    %c0_3 = arith.constant 0 : index
    %c0_4 = arith.constant 0 : index
    %11 = vector.load %arg1[%c0_3, %c0_4] : memref<1x4xf32, #tpu.memory_space<vmem>>, vector<1x4xf32>
    tpu.vector_store %arg1[%c0_3, %c0_4], %10 {strides = array<i32>} : memref<1x4xf32, #tpu.memory_space<vmem>>, vector<1x4xf32>,
    return
  }
}

</mosaic_0001>

<llo_original>
// kernel: variance_encoder_variance.1
$region0: #{variance_encoder_variance.1}
  #allocation0 [shape = 'u32[]', space=smem, size = 0x4, offset = 0x4, fixed_abs, tag = 'smem constant byte address 0x4 - core index']
  #allocation1 [shape = 'u32[144,128]{1,0:T(1,128)}', space=vmem, size = 0x12000, scoped, tag = 'internal scratch']
  %s0 = inlined_call_operand.vmem [shape: f32[1,4], index: 0, kind: input, shape index: {}]
  %s1 = inlined_call_operand.hbm [shape: f32[1,4], index: 1, kind: output, shape index: {}]
  %s2 = sld [smem:[#allocation0]]
  $region14: #{variance_encoder_variance.1} parent=0
    _
  %s4 = ssub.s32 1, %s2
  %s5 = scalar_select 0, %s4, %s2
  $region1: #{variance_encoder_variance.1} parent=0
    #allocation2 [shape = 'u8[512]{0}', space=vmem, size = 0x400, scoped, tag = 'output window, operand 0, single buffered']
    #allocation3 [shape = 's32[1]{0}', space=sflag, size = 0x4, scoped, tag = 'scoped memory for variance_encoder_variance.1']
    %6 = vsyncpa [#allocation3], 0
    // Predicated region
    $region2: #{variance_encoder_variance.1} parent=1 // pred_check
      _
    $region3: #{variance_encoder_variance.1} parent=1 // pred_check_branch
      %8 = sbr.rel (0) target = $region5
    $region4: #{variance_encoder_variance.1} parent=1 // pred_region
      _
    $region5: #{variance_encoder_variance.1} parent=1 // pred_fallthru
      _
    %v9 = vld [vmem:[%s0] sm:$0x1]
    %v10 = vmax.f32 %v9, 0.0
    %v11 = vand.u32 2147483647, %v9
    %v12 = vsub.f32 0.0, %v11
    %v13 = vmul.f32 %v12, 1.442695
    %v14 = vpow.pop %v13
    %v15 = vadd.f32 %v14, 1.0
    %v16 = vlog2.pop %v15
    %v17 = vmul.f32 %v16, 0.6931472
    %v18 = vmul.f32 -0.5, %v14
    %v19 = vadd.f32 %v18, 1.0
    %v20 = vmul.f32 %v19, %v14
    %v21 = vand.u32 2147483647, %v14
    %vm22 = vcmp.lt.f32.partialorder %v21, 0.0004427343
    %v23 = vsel %vm22, %v20, %v17
    %v24 = vadd.f32 %v10, %v23
    %v25 = vadd.f32 %v24, 1e-05
    %vm26 = vcmask 24576
    %27 = vst.msk [vmem:[#allocation2] sm:$0x1] %vm26, %v25
    // Predicated region
    $region6: #{variance_encoder_variance.1} parent=1 // pred_check
      _
    $region7: #{variance_encoder_variance.1} parent=1 // pred_check_branch
      %29 = sbr.rel (0) target = $region9
    $region8: #{variance_encoder_variance.1} parent=1 // pred_region
      %s31 = ssub.s32 16, 16
      %32 = vsyncadd [#allocation3], %s31
      %s34 = sshll.u32 [#allocation2], 4
      %s35 = int_to_ptr.vmem [resolvable:$true] %s34
      %37 = dma.vmem_to_hbm [thread:$0]  %s35, 16, %s1, [#allocation3]
    $region9: #{variance_encoder_variance.1} parent=1 // pred_fallthru
      _
    // Predicated region
    $region10: #{variance_encoder_variance.1} parent=1 // pred_check
      _
    $region11: #{variance_encoder_variance.1} parent=1 // pred_check_branch
      %39 = sbr.rel (0) target = $region13
    $region12: #{variance_encoder_variance.1} parent=1 // pred_region
      %40 = dma.done [#allocation3], 16
    $region13: #{variance_encoder_variance.1} parent=1 // pred_fallthru
      _
    %41 = vsyncpa [#allocation3], 1

</llo_original>
